<compile_context>
chip_gen: v7x
topology: tpu7x:2x2x1
jax: 0.10.0
libtpu: 0.0.40
codegen_flags: <defaults>
</compile_context>

<pallas_src>
import functools

import jax
import jax.numpy as jnp
from jax.experimental import pallas as pl
from jax.experimental.pallas import tpu as pltpu


def _round_up(x: int, m: int) -> int:
    return ((x + m - 1) // m) * m


def _bbox_head_kernel(n_states, max_velocity,
                      q_ref, w1_ref, b1_ref, w2_ref, b2_ref,
                      w3_ref, b3_ref, wm_ref, bm_ref, out_ref):
    """One row-tile of the BoundingBoxHead forward.

    q_ref   [T, D_in]  bf16
    w1,w2   bf16 FFN hidden weights; b1,b2 f32 biases
    w3,b3   pre-padded to the output slab (states at lanes [0, n_states), zeros elsewhere)
    wm,bm   pre-padded to the output slab (mask at lanes [n_states, n_states+n_classes))
    out_ref [T, out_w] f32 = [states | mask | 0-pad]
    """
    q = q_ref[...]                                                            # bf16

    # FFN hidden layers (MXU, bf16 in / f32 accumulate).
    h = jnp.dot(q, w1_ref[...], preferred_element_type=jnp.float32) + b1_ref[...]
    h = jnp.maximum(h, 0.0).astype(jnp.bfloat16)
    h = jnp.dot(h, w2_ref[...], preferred_element_type=jnp.float32) + b2_ref[...]
    h = jnp.maximum(h, 0.0).astype(jnp.bfloat16)

    # Final FFN layer and mask head, both projected straight into the output-slab
    # lane layout -> no lane-offset slices / concats anywhere in the kernel.
    s = jnp.dot(h, w3_ref[...], preferred_element_type=jnp.float32) + b3_ref[...]
    m = jnp.dot(q, wm_ref[...], preferred_element_type=jnp.float32) + bm_ref[...]

    s = jnp.tanh(s)                      # padded / mask lanes are tanh(0) = 0
    if max_velocity is not None:
        # states[..., -1] = sigmoid(tanh(states)[..., -1]) * max_velocity
        # Full-width sigmoid lands on the (idle) EUP slot; lane-iota select keeps
        # the fixup to the last state lane only.
        lane = jax.lax.broadcasted_iota(jnp.int32, s.shape, 1)
        vel = jax.nn.sigmoid(s) * max_velocity
        s = jnp.where(lane == n_states - 1, vel, s)

    out_ref[...] = s + m                 # mask lanes of s and state lanes of m are 0


def pack_params(params, *, weight_dtype=jnp.bfloat16):
    """One-time weight packing (hoist out of the per-call path; reuse across calls)."""
    w1, b1, w2, b2, w3, b3, wm, bm = params
    d_in, d_ffn = w1.shape
    n_states = w3.shape[1]
    n_classes = wm.shape[1]
    out_w = max(8, _round_up(n_states + n_classes, 8))   # true output width (not 128-padded)

    # Pad the final FFN layer and the mask head into the output-slab lane layout.
    w3p = jnp.zeros((d_ffn, out_w), jnp.float32).at[:, :n_states].set(w3)
    b3p = jnp.zeros((out_w,), jnp.float32).at[:n_states].set(b3)
    wmp = jnp.zeros((d_in, out_w), jnp.float32).at[:, n_states:n_states + n_classes].set(wm)
    bmp = jnp.zeros((out_w,), jnp.float32).at[n_states:n_states + n_classes].set(bm)

    return dict(
        w1=w1.astype(weight_dtype), b1=b1.reshape(1, -1).astype(jnp.float32),
        w2=w2.astype(weight_dtype), b2=b2.reshape(1, -1).astype(jnp.float32),
        w3=w3p.astype(weight_dtype), b3=b3p.reshape(1, -1),
        wm=wmp.astype(weight_dtype), bm=bmp.reshape(1, -1),
        d_in=d_in, d_ffn=d_ffn, n_states=n_states, n_classes=n_classes, out_w=out_w,
    )


def bounding_box_head(queries, packed, *, max_velocity=None, multi_class=False):
    """queries: [B, Q, D_in] float32.  Returns (states [B,Q,S], mask [B,Q] or [B,Q,9])."""
    B, Q, D_in = queries.shape
    assert D_in == packed["d_in"]
    N = B * Q
    d_ffn = packed["d_ffn"]
    n_states = packed["n_states"]
    n_classes = packed["n_classes"]
    out_w = packed["out_w"]

    q2d = queries.reshape(N, D_in).astype(jnp.bfloat16)

    # Row tiling: multiple of 16 sublanes (bf16 packing), large tiles to amortize the
    # per-grid-step overhead, but >= 4 steps for large N so both v7x TCs stay busy.
    tile_n = min(1024, max(16, _round_up(pl.cdiv(N, 4), 16)))
    n_pad = _round_up(N, tile_n)
    if n_pad != N:
        q2d = jnp.pad(q2d, ((0, n_pad - N), (0, 0)))

    kernel = functools.partial(_bbox_head_kernel, n_states, max_velocity)

    def const(shape):
        # Resident across the grid (constant index_map).
        # TODO(synk): for large d_ffn on v7x, single-buffer these (pipeline_mode) or DMA
        # them once into scratch to halve resident-weight VMEM.
        return pl.BlockSpec(shape, lambda i: (0, 0))

    out = pl.pallas_call(
        kernel,
        out_shape=jax.ShapeDtypeStruct((n_pad, out_w), jnp.float32),
        grid=(n_pad // tile_n,),
        in_specs=[
            pl.BlockSpec((tile_n, D_in), lambda i: (i, 0)),           # q tile (pipelined)
            const((D_in, d_ffn)), const((1, d_ffn)),                  # layer 1
            const((d_ffn, d_ffn)), const((1, d_ffn)),                 # layer 2
            const((d_ffn, out_w)), const((1, out_w)),                 # layer 3 (padded)
            const((D_in, out_w)), const((1, out_w)),                  # mask head (padded)
        ],
        out_specs=pl.BlockSpec((tile_n, out_w), lambda i: (i, 0)),
        compiler_params=pltpu.CompilerParams(
            dimension_semantics=("parallel",),
        ),
    )(q2d, packed["w1"], packed["b1"], packed["w2"], packed["b2"],
      packed["w3"], packed["b3"], packed["wm"], packed["bm"])

    states = out[:N, :n_states].reshape(B, Q, n_states)
    mask = out[:N, n_states:n_states + n_classes].reshape(B, Q, n_classes)
    if not multi_class:
        mask = mask.squeeze(-1)                       # matches .squeeze(dim=-1)
    return states, mask


def _reference(queries, params, *, max_velocity=None, multi_class=False):
    """Pure-JAX (f32) reference matching the PyTorch forward."""
    w1, b1, w2, b2, w3, b3, wm, bm = params
    h = jnp.maximum(queries @ w1 + b1, 0.0)
    h = jnp.maximum(h @ w2 + b2, 0.0)
    s = jnp.tanh(h @ w3 + b3)
    if max_velocity is not None:
        last = jax.nn.sigmoid(s[..., -1:]) * max_velocity
        s = jnp.concatenate([s[..., :-1], last], axis=-1)
    m = queries @ wm + bm
    if not multi_class:
        m = m.squeeze(-1)
    return s, m


def init_params(key, d_input, d_ffn, n_states, n_classes):
    """Deterministic synthetic init; weights stored [in, out] (PyTorch W transposed)."""
    ks = jax.random.split(key, 8)
    scale = 0.1
    w1 = scale * jax.random.normal(ks[0], (d_input, d_ffn), jnp.float32)
    b1 = scale * jax.random.normal(ks[1], (d_ffn,), jnp.float32)
    w2 = scale * jax.random.normal(ks[2], (d_ffn, d_ffn), jnp.float32)
    b2 = scale * jax.random.normal(ks[3], (d_ffn,), jnp.float32)
    w3 = scale * jax.random.normal(ks[4], (d_ffn, n_states), jnp.float32)
    b3 = scale * jax.random.normal(ks[5], (n_states,), jnp.float32)
    wm = scale * jax.random.normal(ks[6], (d_input, n_classes), jnp.float32)
    bm = scale * jax.random.normal(ks[7], (n_classes,), jnp.float32)
    return (w1, b1, w2, b2, w3, b3, wm, bm)


if __name__ == "__main__":
    # Small shapes consistent with the module: [batch, num_queries, d_input].
    B, Q, D_IN = 2, 16, 32       # N = 32 rows -> 2 grid steps at tile_n = 16
    D_FFN = 32                   # FFN hidden width
    N_STATES = 8                 # len(enum): (x, y, cos, sin, l, w, ..., velocity)
    MULTI_CLASS = False
    N_CLASSES = 9 if MULTI_CLASS else 1
    MAX_VELOCITY = 15.0
    # num_layers = 3 -> Linear(D_IN,D_FFN) -> ReLU -> Linear(D_FFN,D_FFN) -> ReLU -> Linear(D_FFN,N_STATES)

    key = jax.random.PRNGKey(0)
    k_q, k_p = jax.random.split(key)
    queries = jax.random.normal(k_q, (B, Q, D_IN), jnp.float32)
    params = init_params(k_p, D_IN, D_FFN, N_STATES, N_CLASSES)

    packed = pack_params(params)          # one-time packing, reused across calls

    states, mask = bounding_box_head(
        queries, packed, max_velocity=MAX_VELOCITY, multi_class=MULTI_CLASS)
    jax.block_until_ready((states, mask))

    assert states.shape == (B, Q, N_STATES)
    assert mask.shape == (B, Q)

    # Correctness check against a pure-JAX f32 reference (kernel uses bf16 weights).
    ref_states, ref_mask = _reference(
        queries, params, max_velocity=MAX_VELOCITY, multi_class=MULTI_CLASS)
    assert jnp.allclose(states, ref_states, atol=2e-2, rtol=2e-2)
    assert jnp.allclose(mask, ref_mask, atol=2e-2, rtol=2e-2)

    print("KERNEL_OK")
</pallas_src>

<mosaic_0001>
module attributes {stable_mosaic.version = 11 : i64} {
  func.func @_bbox_head_kernel(%arg0: i32, %arg1: memref<16x32xbf16, #tpu.memory_space<vmem>>, %arg2: memref<32x32xbf16, #tpu.memory_space<vmem>>, %arg3: memref<1x32xf32, #tpu.memory_space<vmem>>, %arg4: memref<32x32xbf16, #tpu.memory_space<vmem>>, %arg5: memref<1x32xf32, #tpu.memory_space<vmem>>, %arg6: memref<32x16xbf16, #tpu.memory_space<vmem>>, %arg7: memref<1x16xf32, #tpu.memory_space<vmem>>, %arg8: memref<32x16xbf16, #tpu.memory_space<vmem>>, %arg9: memref<1x16xf32, #tpu.memory_space<vmem>>, %arg10: memref<16x16xf32, #tpu.memory_space<vmem>>) attributes {dimension_semantics = [#tpu.dimension_semantics<parallel>], iteration_bounds = array<i64: 2>, scalar_prefetch = 0 : i64, scratch_operands = 0 : i64, tpu.core_type = #tpu.core_type<tc>, window_params = [{transform_indices = @transform_0, window_bounds = array<i64: 16, 32>}, {pipeline_mode = #tpu.pipeline_mode<synchronous>, transform_indices = @transform_1, window_bounds = array<i64: 32, 32>}, {pipeline_mode = #tpu.pipeline_mode<synchronous>, transform_indices = @transform_2, window_bounds = array<i64: 1, 32>}, {pipeline_mode = #tpu.pipeline_mode<synchronous>, transform_indices = @transform_3, window_bounds = array<i64: 32, 32>}, {pipeline_mode = #tpu.pipeline_mode<synchronous>, transform_indices = @transform_4, window_bounds = array<i64: 1, 32>}, {pipeline_mode = #tpu.pipeline_mode<synchronous>, transform_indices = @transform_5, window_bounds = array<i64: 32, 16>}, {pipeline_mode = #tpu.pipeline_mode<synchronous>, transform_indices = @transform_6, window_bounds = array<i64: 1, 16>}, {pipeline_mode = #tpu.pipeline_mode<synchronous>, transform_indices = @transform_7, window_bounds = array<i64: 32, 16>}, {pipeline_mode = #tpu.pipeline_mode<synchronous>, transform_indices = @transform_8, window_bounds = array<i64: 1, 16>}, {transform_indices = @transform_9, window_bounds = array<i64: 16, 16>}]} {
    %c0 = arith.constant 0 : index
    %c0_0 = arith.constant 0 : index
    %0 = vector.load %arg1[%c0, %c0_0] : memref<16x32xbf16, #tpu.memory_space<vmem>>, vector<16x32xbf16>
    %c0_1 = arith.constant 0 : index
    %c0_2 = arith.constant 0 : index
    %1 = vector.load %arg2[%c0_1, %c0_2] : memref<32x32xbf16, #tpu.memory_space<vmem>>, vector<32x32xbf16>
    %cst = arith.constant dense<0.000000e+00> : vector<16x32xf32>
    %2 = tpu.matmul %0, %1, %cst {dimension_numbers = #tpu.dot_dimension_numbers<[1], [0], [0], [1], [0, 0, 1, 1], [], []>} : vector<16x32xbf16>, vector<32x32xbf16>, vector<16x32xf32> -> vector<16x32xf32>
    %c0_3 = arith.constant 0 : index
    %c0_4 = arith.constant 0 : index
    %3 = vector.load %arg3[%c0_3, %c0_4] : memref<1x32xf32, #tpu.memory_space<vmem>>, vector<1x32xf32>
    %4 = vector.broadcast %3 : vector<1x32xf32> to vector<16x32xf32>
    %5 = arith.addf %2, %4 : vector<16x32xf32>
    %cst_5 = arith.constant 0.000000e+00 : f32
    %6 = vector.broadcast %cst_5 : f32 to vector<16x32xf32>
    %7 = arith.maximumf %5, %6 : vector<16x32xf32>
    %8 = arith.truncf %7 : vector<16x32xf32> to vector<16x32xbf16>
    %c0_6 = arith.constant 0 : index
    %c0_7 = arith.constant 0 : index
    %9 = vector.load %arg4[%c0_6, %c0_7] : memref<32x32xbf16, #tpu.memory_space<vmem>>, vector<32x32xbf16>
    %cst_8 = arith.constant dense<0.000000e+00> : vector<16x32xf32>
    %10 = tpu.matmul %8, %9, %cst_8 {dimension_numbers = #tpu.dot_dimension_numbers<[1], [0], [0], [1], [0, 0, 1, 1], [], []>} : vector<16x32xbf16>, vector<32x32xbf16>, vector<16x32xf32> -> vector<16x32xf32>
    %c0_9 = arith.constant 0 : index
    %c0_10 = arith.constant 0 : index
    %11 = vector.load %arg5[%c0_9, %c0_10] : memref<1x32xf32, #tpu.memory_space<vmem>>, vector<1x32xf32>
    %12 = vector.broadcast %11 : vector<1x32xf32> to vector<16x32xf32>
    %13 = arith.addf %10, %12 : vector<16x32xf32>
    %cst_11 = arith.constant 0.000000e+00 : f32
    %14 = vector.broadcast %cst_11 : f32 to vector<16x32xf32>
    %15 = arith.maximumf %13, %14 : vector<16x32xf32>
    %16 = arith.truncf %15 : vector<16x32xf32> to vector<16x32xbf16>
    %c0_12 = arith.constant 0 : index
    %c0_13 = arith.constant 0 : index
    %17 = vector.load %arg6[%c0_12, %c0_13] : memref<32x16xbf16, #tpu.memory_space<vmem>>, vector<32x16xbf16>
    %cst_14 = arith.constant dense<0.000000e+00> : vector<16x16xf32>
    %18 = tpu.matmul %16, %17, %cst_14 {dimension_numbers = #tpu.dot_dimension_numbers<[1], [0], [0], [1], [0, 0, 1, 1], [], []>} : vector<16x32xbf16>, vector<32x16xbf16>, vector<16x16xf32> -> vector<16x16xf32>
    %c0_15 = arith.constant 0 : index
    %c0_16 = arith.constant 0 : index
    %19 = vector.load %arg7[%c0_15, %c0_16] : memref<1x16xf32, #tpu.memory_space<vmem>>, vector<1x16xf32>
    %20 = vector.broadcast %19 : vector<1x16xf32> to vector<16x16xf32>
    %21 = arith.addf %18, %20 : vector<16x16xf32>
    %c0_17 = arith.constant 0 : index
    %c0_18 = arith.constant 0 : index
    %22 = vector.load %arg8[%c0_17, %c0_18] : memref<32x16xbf16, #tpu.memory_space<vmem>>, vector<32x16xbf16>
    %cst_19 = arith.constant dense<0.000000e+00> : vector<16x16xf32>
    %23 = tpu.matmul %0, %22, %cst_19 {dimension_numbers = #tpu.dot_dimension_numbers<[1], [0], [0], [1], [0, 0, 1, 1], [], []>} : vector<16x32xbf16>, vector<32x16xbf16>, vector<16x16xf32> -> vector<16x16xf32>
    %c0_20 = arith.constant 0 : index
    %c0_21 = arith.constant 0 : index
    %24 = vector.load %arg9[%c0_20, %c0_21] : memref<1x16xf32, #tpu.memory_space<vmem>>, vector<1x16xf32>
    %25 = vector.broadcast %24 : vector<1x16xf32> to vector<16x16xf32>
    %26 = arith.addf %23, %25 : vector<16x16xf32>
    %27 = math.tanh %21 : vector<16x16xf32>
    %28 = tpu.iota {dimensions = array<i32: 1>} : vector<16x16xi32>
    %29 = arith.negf %27 : vector<16x16xf32>
    %30 = math.exp %29 : vector<16x16xf32>
    %cst_22 = arith.constant 1.000000e+00 : f32
    %31 = vector.broadcast %cst_22 : f32 to vector<16x16xf32>
    %32 = arith.addf %31, %30 : vector<16x16xf32>
    %33 = arith.divf %31, %32 : vector<16x16xf32>
    %cst_23 = arith.constant 1.500000e+01 : f32
    %34 = vector.broadcast %cst_23 : f32 to vector<16x16xf32>
    %35 = arith.mulf %33, %34 : vector<16x16xf32>
    %c7_i32 = arith.constant 7 : i32
    %36 = vector.broadcast %c7_i32 : i32 to vector<16x16xi32>
    %37 = arith.cmpi eq, %28, %36 : vector<16x16xi32>
    %38 = arith.select %37, %35, %27 : vector<16x16xi1>, vector<16x16xf32>
    %39 = arith.addf %38, %26 : vector<16x16xf32>
    %c0_24 = arith.constant 0 : index
    %c0_25 = arith.constant 0 : index
    %40 = vector.load %arg10[%c0_24, %c0_25] : memref<16x16xf32, #tpu.memory_space<vmem>>, vector<16x16xf32>
    tpu.vector_store %arg10[%c0_24, %c0_25], %39 {strides = array<i32>} : memref<16x16xf32, #tpu.memory_space<vmem>>, vector<16x16xf32>,
    return
  }
  func.func @transform_0(%arg0: i32) -> (i32, i32) {
    %c0_i32 = arith.constant 0 : i32
    %c0_i32_0 = arith.constant 0 : i32
    return %arg0, %c0_i32 : i32, i32
  }
  func.func @transform_1(%arg0: i32) -> (i32, i32) {
    %c0_i32 = arith.constant 0 : i32
    %c0_i32_0 = arith.constant 0 : i32
    %c0_i32_1 = arith.constant 0 : i32
    return %c0_i32, %c0_i32_0 : i32, i32
  }
  func.func @transform_2(%arg0: i32) -> (i32, i32) {
    %c0_i32 = arith.constant 0 : i32
    %c0_i32_0 = arith.constant 0 : i32
    %c0_i32_1 = arith.constant 0 : i32
    return %c0_i32, %c0_i32_0 : i32, i32
  }
  func.func @transform_3(%arg0: i32) -> (i32, i32) {
    %c0_i32 = arith.constant 0 : i32
    %c0_i32_0 = arith.constant 0 : i32
    %c0_i32_1 = arith.constant 0 : i32
    return %c0_i32, %c0_i32_0 : i32, i32
  }
  func.func @transform_4(%arg0: i32) -> (i32, i32) {
    %c0_i32 = arith.constant 0 : i32
    %c0_i32_0 = arith.constant 0 : i32
    %c0_i32_1 = arith.constant 0 : i32
    return %c0_i32, %c0_i32_0 : i32, i32
  }
  func.func @transform_5(%arg0: i32) -> (i32, i32) {
    %c0_i32 = arith.constant 0 : i32
    %c0_i32_0 = arith.constant 0 : i32
    %c0_i32_1 = arith.constant 0 : i32
    return %c0_i32, %c0_i32_0 : i32, i32
  }
  func.func @transform_6(%arg0: i32) -> (i32, i32) {
    %c0_i32 = arith.constant 0 : i32
    %c0_i32_0 = arith.constant 0 : i32
    %c0_i32_1 = arith.constant 0 : i32
    return %c0_i32, %c0_i32_0 : i32, i32
  }
  func.func @transform_7(%arg0: i32) -> (i32, i32) {
    %c0_i32 = arith.constant 0 : i32
    %c0_i32_0 = arith.constant 0 : i32
    %c0_i32_1 = arith.constant 0 : i32
    return %c0_i32, %c0_i32_0 : i32, i32
  }
  func.func @transform_8(%arg0: i32) -> (i32, i32) {
    %c0_i32 = arith.constant 0 : i32
    %c0_i32_0 = arith.constant 0 : i32
    %c0_i32_1 = arith.constant 0 : i32
    return %c0_i32, %c0_i32_0 : i32, i32
  }
  func.func @transform_9(%arg0: i32) -> (i32, i32) {
    %c0_i32 = arith.constant 0 : i32
    %c0_i32_0 = arith.constant 0 : i32
    return %arg0, %c0_i32 : i32, i32
  }
}

</mosaic_0001>

<llo_original>
// kernel: tpu_custom_call.1
$region0: #{tpu_custom_call.1}
  #allocation0 [shape = 'u32[]', space=smem, size = 0x4, offset = 0x4, fixed_abs, tag = 'smem constant byte address 0x4 - core index']
  #allocation1 [shape = 'u32[144,128]{1,0:T(1,128)}', space=vmem, size = 0x12000, scoped, tag = 'internal scratch']
  %s0 = inlined_call_operand.vmem [shape: bf16[32,32], index: 0, kind: input, shape index: {}]
  %s1 = inlined_call_operand.vmem [shape: bf16[32,32], index: 1, kind: input, shape index: {}]
  %s2 = inlined_call_operand.vmem [shape: f32[1,32], index: 2, kind: input, shape index: {}]
  %s3 = inlined_call_operand.vmem [shape: bf16[32,32], index: 3, kind: input, shape index: {}]
  %s4 = inlined_call_operand.vmem [shape: f32[1,32], index: 4, kind: input, shape index: {}]
  %s5 = inlined_call_operand.vmem [shape: bf16[32,16], index: 5, kind: input, shape index: {}]
  %s6 = inlined_call_operand.vmem [shape: f32[1,16], index: 6, kind: input, shape index: {}]
  %s7 = inlined_call_operand.vmem [shape: bf16[32,16], index: 7, kind: input, shape index: {}]
  %s8 = inlined_call_operand.vmem [shape: f32[1,16], index: 8, kind: input, shape index: {}]
  %s9 = inlined_call_operand.vmem [shape: f32[32,16], index: 9, kind: output, shape index: {}]
  %s10 = sld [smem:[#allocation0]]
  $region69: #{tpu_custom_call.1} parent=0
    _
  %s12 = ssub.s32 1, %s10
  %s13 = scalar_select 0, %s12, %s10
  loop: start=0, step=1, limit=4
  $region2: #{tpu_custom_call.1} parent=0 // loop_pre_header
    _
  $region3: #{tpu_custom_call.1} parent=0 // loop_header
    %s15 = sphi 0, %s19
    %p16 = scmp.ge.s32.totalorder %s15, 4
    %s25 = sphi 0, %s27
    %s28 = sphi 0, %s25
    %s29 = sphi 0, %s28
    %s45 = sphi 0, %s29
    %s49 = sphi 0, %s49
    %s51 = sphi 0, %s49
    %s52 = sphi 0, %s51
    %s66 = sphi 0, %s52
    %s70 = sphi 0, %s70
    %s72 = sphi 0, %s70
    %s73 = sphi 0, %s72
    %s87 = sphi 0, %s73
    %s91 = sphi 0, %s91
    %s93 = sphi 0, %s91
    %s94 = sphi 0, %s93
    %s108 = sphi 0, %s94
    %s112 = sphi 0, %s112
    %s114 = sphi 0, %s112
    %s115 = sphi 0, %s114
    %s129 = sphi 0, %s115
    %s133 = sphi 0, %s133
    %s135 = sphi 0, %s133
    %s136 = sphi 0, %s135
    %s150 = sphi 0, %s136
    %s154 = sphi 0, %s154
    %s156 = sphi 0, %s154
    %s157 = sphi 0, %s156
    %s171 = sphi 0, %s157
    %s175 = sphi 0, %s175
    %s177 = sphi 0, %s175
    %s178 = sphi 0, %s177
    %s192 = sphi 0, %s178
    %s196 = sphi 0, %s196
    %s198 = sphi 0, %s196
    %s199 = sphi 0, %s198
    %s213 = sphi 0, %s199
    %s219 = sphi 0, %s221
    %s222 = sphi 0, %s219
    %s223 = sphi 0, %s222
    %s239 = sphi 0, %s223
  $region4: #{tpu_custom_call.1} parent=0 // loop_header_branch
    %18 = sbr.rel (%p16) target = $region8
  $region5: #{tpu_custom_call.1} parent=0 // loop_body
    %s20 = ssub.s32 %s15, 1
    %s21 = ssub.s32 %s15, 2
    %s22 = sadd.s32 %s15, 1
    %s23 = ssub.s32 %s15, %s22
    %p24 = scmp.eq.s32.totalorder %s23, 0
    %s26 = sadd.s32 %s25, 1
    %s27 = scalar_select %p24, %s25, %s26
    %p30 = pneg %p24
    %p31 = scmp.eq.s32.totalorder %s15, 1
    %p32 = por %p30, %p31
    %p33 = scmp.ne.s32.totalorder %s25, %s28
    %p34 = scmp.eq.s32.totalorder %s15, 0
    %p35 = por %p33, %p34
    %p36 = scmp.ne.s32.totalorder %s25, %s28
    %p37 = scmp.eq.s32.totalorder %s20, 1
    %p38 = por %p36, %p37
    %p39 = scmp.ne.s32.totalorder %s28, %s29
    %p40 = scmp.eq.s32.totalorder %s20, 0
    %p41 = por %p39, %p40
    %p42 = scmp.ne.s32.totalorder %s28, %s29
    %p43 = scmp.eq.s32.totalorder %s21, 1
    %p44 = por %p42, %p43
    %p46 = scmp.ne.s32.totalorder %s29, %s45
    %p47 = scmp.eq.s32.totalorder %s21, 0
    %p48 = por %p46, %p47
    %s50 = sadd.s32 %s49, 1
    %p53 = scmp.eq.s32.totalorder %s15, 1
    %p54 = scmp.ne.s32.totalorder %s49, %s51
    %p55 = scmp.eq.s32.totalorder %s15, 0
    %p56 = por %p54, %p55
    %p57 = scmp.ne.s32.totalorder %s49, %s51
    %p58 = scmp.eq.s32.totalorder %s20, 1
    %p59 = por %p57, %p58
    %p60 = scmp.ne.s32.totalorder %s51, %s52
    %p61 = scmp.eq.s32.totalorder %s20, 0
    %p62 = por %p60, %p61
    %p63 = scmp.ne.s32.totalorder %s51, %s52
    %p64 = scmp.eq.s32.totalorder %s21, 1
    %p65 = por %p63, %p64
    %p67 = scmp.ne.s32.totalorder %s52, %s66
    %p68 = scmp.eq.s32.totalorder %s21, 0
    %p69 = por %p67, %p68
    %s71 = sadd.s32 %s70, 1
    %p74 = scmp.eq.s32.totalorder %s15, 1
    %p75 = scmp.ne.s32.totalorder %s70, %s72
    %p76 = scmp.eq.s32.totalorder %s15, 0
    %p77 = por %p75, %p76
    %p78 = scmp.ne.s32.totalorder %s70, %s72
    %p79 = scmp.eq.s32.totalorder %s20, 1
    %p80 = por %p78, %p79
    %p81 = scmp.ne.s32.totalorder %s72, %s73
    %p82 = scmp.eq.s32.totalorder %s20, 0
    %p83 = por %p81, %p82
    %p84 = scmp.ne.s32.totalorder %s72, %s73
    %p85 = scmp.eq.s32.totalorder %s21, 1
    %p86 = por %p84, %p85
    %p88 = scmp.ne.s32.totalorder %s73, %s87
    %p89 = scmp.eq.s32.totalorder %s21, 0
    %p90 = por %p88, %p89
    %s92 = sadd.s32 %s91, 1
    %p95 = scmp.eq.s32.totalorder %s15, 1
    %p96 = scmp.ne.s32.totalorder %s91, %s93
    %p97 = scmp.eq.s32.totalorder %s15, 0
    %p98 = por %p96, %p97
    %p99 = scmp.ne.s32.totalorder %s91, %s93
    %p100 = scmp.eq.s32.totalorder %s20, 1
    %p101 = por %p99, %p100
    %p102 = scmp.ne.s32.totalorder %s93, %s94
    %p103 = scmp.eq.s32.totalorder %s20, 0
    %p104 = por %p102, %p103
    %p105 = scmp.ne.s32.totalorder %s93, %s94
    %p106 = scmp.eq.s32.totalorder %s21, 1
    %p107 = por %p105, %p106
    %p109 = scmp.ne.s32.totalorder %s94, %s108
    %p110 = scmp.eq.s32.totalorder %s21, 0
    %p111 = por %p109, %p110
    %s113 = sadd.s32 %s112, 1
    %p116 = scmp.eq.s32.totalorder %s15, 1
    %p117 = scmp.ne.s32.totalorder %s112, %s114
    %p118 = scmp.eq.s32.totalorder %s15, 0
    %p119 = por %p117, %p118
    %p120 = scmp.ne.s32.totalorder %s112, %s114
    %p121 = scmp.eq.s32.totalorder %s20, 1
    %p122 = por %p120, %p121
    %p123 = scmp.ne.s32.totalorder %s114, %s115
    %p124 = scmp.eq.s32.totalorder %s20, 0
    %p125 = por %p123, %p124
    %p126 = scmp.ne.s32.totalorder %s114, %s115
    %p127 = scmp.eq.s32.totalorder %s21, 1
    %p128 = por %p126, %p127
    %p130 = scmp.ne.s32.totalorder %s115, %s129
    %p131 = scmp.eq.s32.totalorder %s21, 0
    %p132 = por %p130, %p131
    %s134 = sadd.s32 %s133, 1
    %p137 = scmp.eq.s32.totalorder %s15, 1
    %p138 = scmp.ne.s32.totalorder %s133, %s135
    %p139 = scmp.eq.s32.totalorder %s15, 0
    %p140 = por %p138, %p139
    %p141 = scmp.ne.s32.totalorder %s133, %s135
    %p142 = scmp.eq.s32.totalorder %s20, 1
    %p143 = por %p141, %p142
    %p144 = scmp.ne.s32.totalorder %s135, %s136
    %p145 = scmp.eq.s32.totalorder %s20, 0
    %p146 = por %p144, %p145
    %p147 = scmp.ne.s32.totalorder %s135, %s136
    %p148 = scmp.eq.s32.totalorder %s21, 1
    %p149 = por %p147, %p148
    %p151 = scmp.ne.s32.totalorder %s136, %s150
    %p152 = scmp.eq.s32.totalorder %s21, 0
    %p153 = por %p151, %p152
    %s155 = sadd.s32 %s154, 1
    %p158 = scmp.eq.s32.totalorder %s15, 1
    %p159 = scmp.ne.s32.totalorder %s154, %s156
    %p160 = scmp.eq.s32.totalorder %s15, 0
    %p161 = por %p159, %p160
    %p162 = scmp.ne.s32.totalorder %s154, %s156
    %p163 = scmp.eq.s32.totalorder %s20, 1
    %p164 = por %p162, %p163
    %p165 = scmp.ne.s32.totalorder %s156, %s157
    %p166 = scmp.eq.s32.totalorder %s20, 0
    %p167 = por %p165, %p166
    %p168 = scmp.ne.s32.totalorder %s156, %s157
    %p169 = scmp.eq.s32.totalorder %s21, 1
    %p170 = por %p168, %p169
    %p172 = scmp.ne.s32.totalorder %s157, %s171
    %p173 = scmp.eq.s32.totalorder %s21, 0
    %p174 = por %p172, %p173
    %s176 = sadd.s32 %s175, 1
    %p179 = scmp.eq.s32.totalorder %s15, 1
    %p180 = scmp.ne.s32.totalorder %s175, %s177
    %p181 = scmp.eq.s32.totalorder %s15, 0
    %p182 = por %p180, %p181
    %p183 = scmp.ne.s32.totalorder %s175, %s177
    %p184 = scmp.eq.s32.totalorder %s20, 1
    %p185 = por %p183, %p184
    %p186 = scmp.ne.s32.totalorder %s177, %s178
    %p187 = scmp.eq.s32.totalorder %s20, 0
    %p188 = por %p186, %p187
    %p189 = scmp.ne.s32.totalorder %s177, %s178
    %p190 = scmp.eq.s32.totalorder %s21, 1
    %p191 = por %p189, %p190
    %p193 = scmp.ne.s32.totalorder %s178, %s192
    %p194 = scmp.eq.s32.totalorder %s21, 0
    %p195 = por %p193, %p194
    %s197 = sadd.s32 %s196, 1
    %p200 = scmp.eq.s32.totalorder %s15, 1
    %p201 = scmp.ne.s32.totalorder %s196, %s198
    %p202 = scmp.eq.s32.totalorder %s15, 0
    %p203 = por %p201, %p202
    %p204 = scmp.ne.s32.totalorder %s196, %s198
    %p205 = scmp.eq.s32.totalorder %s20, 1
    %p206 = por %p204, %p205
    %p207 = scmp.ne.s32.totalorder %s198, %s199
    %p208 = scmp.eq.s32.totalorder %s20, 0
    %p209 = por %p207, %p208
    %p210 = scmp.ne.s32.totalorder %s198, %s199
    %p211 = scmp.eq.s32.totalorder %s21, 1
    %p212 = por %p210, %p211
    %p214 = scmp.ne.s32.totalorder %s199, %s213
    %p215 = scmp.eq.s32.totalorder %s21, 0
    %p216 = por %p214, %p215
    %s217 = ssub.s32 %s15, %s22
    %p218 = scmp.eq.s32.totalorder %s217, 0
    %s220 = sadd.s32 %s219, 1
    %s221 = scalar_select %p218, %s219, %s220
    %p224 = pneg %p218
    %p225 = scmp.eq.s32.totalorder %s15, 1
    %p226 = por %p224, %p225
    %p227 = scmp.ne.s32.totalorder %s219, %s222
    %p228 = scmp.eq.s32.totalorder %s15, 0
    %p229 = por %p227, %p228
    %p230 = scmp.ne.s32.totalorder %s219, %s222
    %p231 = scmp.eq.s32.totalorder %s20, 1
    %p232 = por %p230, %p231
    %p233 = scmp.ne.s32.totalorder %s222, %s223
    %p234 = scmp.eq.s32.totalorder %s20, 0
    %p235 = por %p233, %p234
    %p236 = scmp.ne.s32.totalorder %s222, %s223
    %p237 = scmp.eq.s32.totalorder %s21, 1
    %p238 = por %p236, %p237
    %p240 = scmp.ne.s32.totalorder %s223, %s239
    %p241 = scmp.eq.s32.totalorder %s21, 0
    %p242 = por %p240, %p241
    %p243 = scmp.le.s32.totalorder 1, %s15
    %p244 = scmp.lt.s32.totalorder %s15, 3
    %p245 = pnand %p243, %p244
    %p246 = pneg %p245
    // Predicated region
    $region9: #{tpu_custom_call.1} parent=5 // pred_check
      _
    $region10: #{tpu_custom_call.1} parent=5 // pred_check_branch
      %248 = sbr.rel (%p245) target = $region12
    $region11: #{tpu_custom_call.1} parent=5 // pred_region
      %s249 = ssub.s32 %s15, 1
      // Predicated region
      $region13: #{tpu_custom_call.1} parent=11 // pred_check
        %p250 = pneg %p62
      $region14: #{tpu_custom_call.1} parent=11 // pred_check_branch
        %252 = sbr.rel (%p250) target = $region16
      $region15: #{tpu_custom_call.1} parent=11 // pred_region
        _
      $region16: #{tpu_custom_call.1} parent=11 // pred_fallthru
        _
      // Predicated region
      $region17: #{tpu_custom_call.1} parent=11 // pred_check
        %p253 = pneg %p83
      $region18: #{tpu_custom_call.1} parent=11 // pred_check_branch
        %255 = sbr.rel (%p253) target = $region20
      $region19: #{tpu_custom_call.1} parent=11 // pred_region
        _
      $region20: #{tpu_custom_call.1} parent=11 // pred_fallthru
        _
      // Predicated region
      $region21: #{tpu_custom_call.1} parent=11 // pred_check
        %p256 = pneg %p104
      $region22: #{tpu_custom_call.1} parent=11 // pred_check_branch
        %258 = sbr.rel (%p256) target = $region24
      $region23: #{tpu_custom_call.1} parent=11 // pred_region
        _
      $region24: #{tpu_custom_call.1} parent=11 // pred_fallthru
        _
      // Predicated region
      $region25: #{tpu_custom_call.1} parent=11 // pred_check
        %p259 = pneg %p125
      $region26: #{tpu_custom_call.1} parent=11 // pred_check_branch
        %261 = sbr.rel (%p259) target = $region28
      $region27: #{tpu_custom_call.1} parent=11 // pred_region
        _
      $region28: #{tpu_custom_call.1} parent=11 // pred_fallthru
        _
      // Predicated region
      $region29: #{tpu_custom_call.1} parent=11 // pred_check
        %p262 = pneg %p146
      $region30: #{tpu_custom_call.1} parent=11 // pred_check_branch
        %264 = sbr.rel (%p262) target = $region32
      $region31: #{tpu_custom_call.1} parent=11 // pred_region
        _
      $region32: #{tpu_custom_call.1} parent=11 // pred_fallthru
        _
      // Predicated region
      $region33: #{tpu_custom_call.1} parent=11 // pred_check
        %p265 = pneg %p167
      $region34: #{tpu_custom_call.1} parent=11 // pred_check_branch
        %267 = sbr.rel (%p265) target = $region36
      $region35: #{tpu_custom_call.1} parent=11 // pred_region
        _
      $region36: #{tpu_custom_call.1} parent=11 // pred_fallthru
        _
      // Predicated region
      $region37: #{tpu_custom_call.1} parent=11 // pred_check
        %p268 = pneg %p188
      $region38: #{tpu_custom_call.1} parent=11 // pred_check_branch
        %270 = sbr.rel (%p268) target = $region40
      $region39: #{tpu_custom_call.1} parent=11 // pred_region
        _
      $region40: #{tpu_custom_call.1} parent=11 // pred_fallthru
        _
      // Predicated region
      $region41: #{tpu_custom_call.1} parent=11 // pred_check
        %p271 = pneg %p209
      $region42: #{tpu_custom_call.1} parent=11 // pred_check_branch
        %273 = sbr.rel (%p271) target = $region44
      $region43: #{tpu_custom_call.1} parent=11 // pred_region
        _
      $region44: #{tpu_custom_call.1} parent=11 // pred_fallthru
        _
    $region12: #{tpu_custom_call.1} parent=5 // pred_fallthru
      _
    %p274 = scmp.lt.s32.totalorder %s15, 2
    // Predicated region
    $region45: #{tpu_custom_call.1} parent=5 // pred_check
      %p275 = pneg %p274
    $region46: #{tpu_custom_call.1} parent=5 // pred_check_branch
      %277 = sbr.rel (%p275) target = $region48
    $region47: #{tpu_custom_call.1} parent=5 // pred_region
      // Predicated region
      $region49: #{tpu_custom_call.1} parent=47 // pred_check
        %p278 = pneg %p35
      $region50: #{tpu_custom_call.1} parent=47 // pred_check_branch
        %280 = sbr.rel (%p278) target = $region52
      $region51: #{tpu_custom_call.1} parent=47 // pred_region
        %s281 = smul.u32 2, %s15
        %p282 = scmp.lt.s32.totalorder %s281, 3
        %s283 = scalar_select %p282, %s281, 3
        %s284 = smul.addr %s283, 4
        %s285 = scalar_lea.vmem %s0, %s284
        %s286 = smul.u32 2, %s15
      $region52: #{tpu_custom_call.1} parent=47 // pred_fallthru
        _
    $region48: #{tpu_custom_call.1} parent=5 // pred_fallthru
      _
    %p287 = scmp.le.s32.totalorder 1, %s15
    %p288 = scmp.lt.s32.totalorder %s15, 3
    %p289 = pnand %p287, %p288
    %p290 = pneg %p289
    // Predicated region
    $region53: #{tpu_custom_call.1} parent=5 // pred_check
      _
    $region54: #{tpu_custom_call.1} parent=5 // pred_check_branch
      %292 = sbr.rel (%p289) target = $region56
    $region55: #{tpu_custom_call.1} parent=5 // pred_region
      %s293 = ssub.s32 %s15, 1
      %s294 = smul.u32 2, %s20
      %p295 = scmp.lt.s32.totalorder %s294, 3
      %s296 = scalar_select %p295, %s294, 3
      %s297 = smul.addr %s296, 4
      %s298 = scalar_lea.vmem %s0, %s297
      %p299 = pneg %p41
      %p300 = pneg %p38
      %p301 = pneg %p62
      %p302 = pneg %p59
      %p303 = pneg %p83
      %p304 = pneg %p80
      %p305 = pneg %p104
      %p306 = pneg %p101
      %p307 = pneg %p125
      %p308 = pneg %p122
      %p309 = pneg %p146
      %p310 = pneg %p143
      %p311 = pneg %p167
      %p312 = pneg %p164
      %p313 = pneg %p188
      %p314 = pneg %p185
      %p315 = pneg %p209
      %p316 = pneg %p206
      %p317 = pneg %p235
      %p318 = pneg %p232
      %s319 = smul.u32 2, %s20
      %p320 = scmp.lt.s32.totalorder %s319, 3
      %s321 = scalar_select %p320, %s319, 3
      %s322 = smul.addr %s321, 8
      %s323 = scalar_lea.vmem %s9, %s322
      %s324 = smul.u32 2, %s20
      %p325 = scmp.lt.s32.totalorder %s324, 3
      %s326 = scalar_select %p325, %s324, 3
      %s327 = smul.addr %s326, 4
      %s328 = scalar_lea.vmem %s0, %s327
      %s329 = smul.u32 2, %s20
      %s330 = smul.u32 2, %s20
      %p331 = scmp.lt.s32.totalorder %s330, 3
      %s332 = scalar_select %p331, %s330, 3
      %s333 = smul.addr %s332, 8
      %s334 = scalar_lea.vmem %s9, %s333
      %s335 = smul.u32 2, %s20
      %v337 = vld [vmem:[%s328] sm:$0xf]
      %v338 = vld [vmem:[%s328 + $0x4] sm:$0xf]
      %v339 = vld [vmem:[%s1] sm:$0xf]
      %v340 = vld [vmem:[%s1 + $0x4] sm:$0xf]
      %v341 = vld [vmem:[%s1 + $0x8] sm:$0xf]
      %v342 = vld [vmem:[%s1 + $0xc] sm:$0xf]
      %v343 = vld [vmem:[%s2] sm:$0x1]
      %v345 = vlaneseq
      %v346 = vshrl.u32 %v345, 7
      %v347 = vsub.s32 0, %v346
      %v348 = vrot.slane %v343, %v347
      %v352 = vunpack.c.l.b16 %v337
      %v353 = vunpack.c.l.b16 %v338
      %v354 = vpack.c.b16 %v353, %v352
      %v359 = vunpack.c.l.b16 %v339
      %v360 = vunpack.c.l.b16 %v340
      %v361 = vunpack.c.l.b16 %v341
      %v362 = vunpack.c.l.b16 %v342
      %v363 = vpack.c.b16 %v360, %v359
      %v364 = vpack.c.b16 %v362, %v361
      %vm367 = vcmask 261120
      %v369 = vsel %vm367, %v354, 0
      %371 = vmatprep.subr.bf16.mxu0 0
      %372 = vmatpush1.bf16.msra.mxu0 %v363
      %373 = vmatprep.subr.bf16.mxu0 0
      %374 = vmatpush1.bf16.msra.mxu0 %v364
      %375 = vmatprep.subr.bf16.mxu0 0
      %376 = vmatpush1.bf16.msra.mxu0 0
      %377 = vmatprep.subr.bf16.mxu0 0
      %378 = vmatpush1.bf16.msra.mxu0 0
      %379 = vmatprep.subr.bf16.mxu0 0
      %380 = vmatpush1.bf16.msra.mxu0 0
      %381 = vmatprep.subr.bf16.mxu0 0
      %382 = vmatpush1.bf16.msra.mxu0 0
      %383 = vmatprep.subr.bf16.mxu0 0
      %384 = vmatpush1.bf16.msra.mxu0 0
      %385 = vmatprep.subr.bf16.mxu0 0
      %386 = vmatpush1.bf16.msra.mxu0 0
      %387 = vmatprep.subr.bf16.mxu0 0
      %388 = vmatpush1.bf16.msra.mxu0 0
      %389 = vmatprep.subr.bf16.mxu0 0
      %390 = vmatpush1.bf16.msra.mxu0 0
      %391 = vmatprep.subr.bf16.mxu0 0
      %392 = vmatpush1.bf16.msra.mxu0 0
      %393 = vmatprep.subr.bf16.mxu0 0
      %394 = vmatpush1.bf16.msra.mxu0 0
      %395 = vmatprep.subr.bf16.mxu0 0
      %396 = vmatpush1.bf16.msra.mxu0 0
      %397 = vmatprep.subr.bf16.mxu0 0
      %398 = vmatpush1.bf16.msra.mxu0 0
      %399 = vmatprep.subr.bf16.mxu0 0
      %400 = vmatpush1.bf16.msra.mxu0 0
      %401 = vmatprep.subr.bf16.mxu0 0
      %402 = vmatpush1.bf16.msra.mxu0 0
      %403 = vmatprep.mubr.bf16.mxu0 0
      %404 = vmatmul.mubr.bf16.gmra.mrb[0].mxu0 %v369
      %v405 = vpop.f32.mrb[0].mxu0
      %v406 = vadd.f32 %v348, %v405
      %v407 = vpop.f32.mrb[0].mxu0
      %v408 = vpop.f32.mrb[0].mxu0
      %v409 = vadd.f32 %v348, %v408
      %v410 = vpop.f32.mrb[0].mxu0
      %411 = vdwg.mxu0
      %v412 = vmax.f32 %v406, 0.0
      %v413 = vmax.f32 %v409, 0.0
      %v414 = vpack.c.bf16 %v413, %v412
      %v415 = vld [vmem:[%s3] sm:$0xf]
      %v416 = vld [vmem:[%s3 + $0x4] sm:$0xf]
      %v417 = vld [vmem:[%s3 + $0x8] sm:$0xf]
      %v418 = vld [vmem:[%s3 + $0xc] sm:$0xf]
      %v419 = vld [vmem:[%s4] sm:$0x1]
      %v421 = vlaneseq
      %v422 = vshrl.u32 %v421, 7
      %v423 = vsub.s32 0, %v422
      %v424 = vrot.slane %v419, %v423
      %v430 = vunpack.c.l.b16 %v415
      %v431 = vunpack.c.l.b16 %v416
      %v432 = vunpack.c.l.b16 %v417
      %v433 = vunpack.c.l.b16 %v418
      %v434 = vpack.c.b16 %v431, %v430
      %v435 = vpack.c.b16 %v433, %v432
      %v439 = vsel %vm367, %v414, 0
      %441 = vmatprep.subr.bf16.mxu0 0
      %442 = vmatpush1.bf16.msra.mxu0 %v434
      %443 = vmatprep.subr.bf16.mxu0 0
      %444 = vmatpush1.bf16.msra.mxu0 %v435
      %445 = vmatprep.subr.bf16.mxu0 0
      %446 = vmatpush1.bf16.msra.mxu0 0
      %447 = vmatprep.subr.bf16.mxu0 0
      %448 = vmatpush1.bf16.msra.mxu0 0
      %449 = vmatprep.subr.bf16.mxu0 0
      %450 = vmatpush1.bf16.msra.mxu0 0
      %451 = vmatprep.subr.bf16.mxu0 0
      %452 = vmatpush1.bf16.msra.mxu0 0
      %453 = vmatprep.subr.bf16.mxu0 0
      %454 = vmatpush1.bf16.msra.mxu0 0
      %455 = vmatprep.subr.bf16.mxu0 0
      %456 = vmatpush1.bf16.msra.mxu0 0
      %457 = vmatprep.subr.bf16.mxu0 0
      %458 = vmatpush1.bf16.msra.mxu0 0
      %459 = vmatprep.subr.bf16.mxu0 0
      %460 = vmatpush1.bf16.msra.mxu0 0
      %461 = vmatprep.subr.bf16.mxu0 0
      %462 = vmatpush1.bf16.msra.mxu0 0
      %463 = vmatprep.subr.bf16.mxu0 0
      %464 = vmatpush1.bf16.msra.mxu0 0
      %465 = vmatprep.subr.bf16.mxu0 0
      %466 = vmatpush1.bf16.msra.mxu0 0
      %467 = vmatprep.subr.bf16.mxu0 0
      %468 = vmatpush1.bf16.msra.mxu0 0
      %469 = vmatprep.subr.bf16.mxu0 0
      %470 = vmatpush1.bf16.msra.mxu0 0
      %471 = vmatprep.subr.bf16.mxu0 0
      %472 = vmatpush1.bf16.msra.mxu0 0
      %473 = vmatprep.mubr.bf16.mxu0 0
      %474 = vmatmul.mubr.bf16.gmra.mrb[0].mxu0 %v439
      %v475 = vpop.f32.mrb[0].mxu0
      %v476 = vadd.f32 %v424, %v475
      %v477 = vpop.f32.mrb[0].mxu0
      %v478 = vpop.f32.mrb[0].mxu0
      %v479 = vadd.f32 %v424, %v478
      %v480 = vpop.f32.mrb[0].mxu0
      %481 = vdwg.mxu0
      %v482 = vmax.f32 %v476, 0.0
      %v483 = vmax.f32 %v479, 0.0
      %v484 = vpack.c.bf16 %v483, %v482
      %v485 = vld [vmem:[%s5] sm:$0xf]
      %v486 = vld [vmem:[%s5 + $0x4] sm:$0xf]
      %v487 = vld [vmem:[%s5 + $0x8] sm:$0xf]
      %v488 = vld [vmem:[%s5 + $0xc] sm:$0xf]
      %v489 = vld [vmem:[%s6] sm:$0x1]
      %v491 = vlaneseq
      %v492 = vshrl.u32 %v491, 7
      %v493 = vsub.s32 0, %v492
      %v494 = vrot.slane %v489, %v493
      %v500 = vunpack.c.l.b16 %v485
      %v501 = vunpack.c.l.b16 %v486
      %v502 = vunpack.c.l.b16 %v487
      %v503 = vunpack.c.l.b16 %v488
      %v504 = vpack.c.b16 %v501, %v500
      %v505 = vpack.c.b16 %v503, %v502
      %v509 = vsel %vm367, %v484, 0
      %511 = vmatprep.subr.bf16.mxu0 0
      %512 = vmatpush1.bf16.msra.mxu0 %v504
      %513 = vmatprep.subr.bf16.mxu0 0
      %514 = vmatpush1.bf16.msra.mxu0 %v505
      %515 = vmatprep.subr.bf16.mxu0 0
      %516 = vmatpush1.bf16.msra.mxu0 0
      %517 = vmatprep.subr.bf16.mxu0 0
      %518 = vmatpush1.bf16.msra.mxu0 0
      %519 = vmatprep.subr.bf16.mxu0 0
      %520 = vmatpush1.bf16.msra.mxu0 0
      %521 = vmatprep.subr.bf16.mxu0 0
      %522 = vmatpush1.bf16.msra.mxu0 0
      %523 = vmatprep.subr.bf16.mxu0 0
      %524 = vmatpush1.bf16.msra.mxu0 0
      %525 = vmatprep.subr.bf16.mxu0 0
      %526 = vmatpush1.bf16.msra.mxu0 0
      %527 = vmatprep.subr.bf16.mxu0 0
      %528 = vmatpush1.bf16.msra.mxu0 0
      %529 = vmatprep.subr.bf16.mxu0 0
      %530 = vmatpush1.bf16.msra.mxu0 0
      %531 = vmatprep.subr.bf16.mxu0 0
      %532 = vmatpush1.bf16.msra.mxu0 0
      %533 = vmatprep.subr.bf16.mxu0 0
      %534 = vmatpush1.bf16.msra.mxu0 0
      %535 = vmatprep.subr.bf16.mxu0 0
      %536 = vmatpush1.bf16.msra.mxu0 0
      %537 = vmatprep.subr.bf16.mxu0 0
      %538 = vmatpush1.bf16.msra.mxu0 0
      %539 = vmatprep.subr.bf16.mxu0 0
      %540 = vmatpush1.bf16.msra.mxu0 0
      %541 = vmatprep.subr.bf16.mxu0 0
      %542 = vmatpush1.bf16.msra.mxu0 0
      %543 = vmatprep.mubr.bf16.mxu0 0
      %544 = vmatmul.mubr.bf16.gmra.mrb[0].mxu0 %v509
      %v545 = vpop.f32.mrb[0].mxu0
      %v546 = vadd.f32 %v494, %v545
      %v547 = vpop.f32.mrb[0].mxu0
      %v548 = vpop.f32.mrb[0].mxu0
      %v549 = vadd.f32 %v494, %v548
      %v550 = vpop.f32.mrb[0].mxu0
      %551 = vdwg.mxu0
      %v552 = vld [vmem:[%s7] sm:$0xf]
      %v553 = vld [vmem:[%s7 + $0x4] sm:$0xf]
      %v554 = vld [vmem:[%s7 + $0x8] sm:$0xf]
      %v555 = vld [vmem:[%s7 + $0xc] sm:$0xf]
      %v556 = vld [vmem:[%s8] sm:$0x1]
      %v558 = vlaneseq
      %v559 = vshrl.u32 %v558, 7
      %v560 = vsub.s32 0, %v559
      %v561 = vrot.slane %v556, %v560
      %v567 = vunpack.c.l.b16 %v552
      %v568 = vunpack.c.l.b16 %v553
      %v569 = vunpack.c.l.b16 %v554
      %v570 = vunpack.c.l.b16 %v555
      %v571 = vpack.c.b16 %v568, %v567
      %v572 = vpack.c.b16 %v570, %v569
      %575 = vmatprep.subr.bf16.mxu0 0
      %576 = vmatpush1.bf16.msra.mxu0 %v571
      %577 = vmatprep.subr.bf16.mxu0 0
      %578 = vmatpush1.bf16.msra.mxu0 %v572
      %579 = vmatprep.subr.bf16.mxu0 0
      %580 = vmatpush1.bf16.msra.mxu0 0
      %581 = vmatprep.subr.bf16.mxu0 0
      %582 = vmatpush1.bf16.msra.mxu0 0
      %583 = vmatprep.subr.bf16.mxu0 0
      %584 = vmatpush1.bf16.msra.mxu0 0
      %585 = vmatprep.subr.bf16.mxu0 0
      %586 = vmatpush1.bf16.msra.mxu0 0
      %587 = vmatprep.subr.bf16.mxu0 0
      %588 = vmatpush1.bf16.msra.mxu0 0
      %589 = vmatprep.subr.bf16.mxu0 0
      %590 = vmatpush1.bf16.msra.mxu0 0
      %591 = vmatprep.subr.bf16.mxu0 0
      %592 = vmatpush1.bf16.msra.mxu0 0
      %593 = vmatprep.subr.bf16.mxu0 0
      %594 = vmatpush1.bf16.msra.mxu0 0
      %595 = vmatprep.subr.bf16.mxu0 0
      %596 = vmatpush1.bf16.msra.mxu0 0
      %597 = vmatprep.subr.bf16.mxu0 0
      %598 = vmatpush1.bf16.msra.mxu0 0
      %599 = vmatprep.subr.bf16.mxu0 0
      %600 = vmatpush1.bf16.msra.mxu0 0
      %601 = vmatprep.subr.bf16.mxu0 0
      %602 = vmatpush1.bf16.msra.mxu0 0
      %603 = vmatprep.subr.bf16.mxu0 0
      %604 = vmatpush1.bf16.msra.mxu0 0
      %605 = vmatprep.subr.bf16.mxu0 0
      %606 = vmatpush1.bf16.msra.mxu0 0
      %607 = vmatprep.mubr.bf16.mxu0 0
      %608 = vmatmul.mubr.bf16.gmra.mrb[0].mxu0 %v369
      %v609 = vpop.f32.mrb[0].mxu0
      %v610 = vadd.f32 %v561, %v609
      %v611 = vpop.f32.mrb[0].mxu0
      %v612 = vpop.f32.mrb[0].mxu0
      %v613 = vadd.f32 %v561, %v612
      %v614 = vpop.f32.mrb[0].mxu0
      %615 = vdwg.mxu0
      %v616 = vtanh.pop %v546
      %v617 = vtanh.pop %v549
      %v618 = vlaneseq
      %v619 = vand.u32 %v618, 127
      %v620 = vxor.u32 %v616, 2147483648
      %v621 = vxor.u32 %v617, 2147483648
      %v622 = vmul.f32 %v620, 1.442695
      %v623 = vpow.pop %v622
      %v624 = vmul.f32 %v621, 1.442695
      %v625 = vpow.pop %v624
      %v626 = vadd.f32 %v623, 1.0
      %v627 = vadd.f32 %v625, 1.0
      %v628 = vrcp.pop %v626
      %v629 = vmul.f32 1.0, %v628
      %v630 = vrcp.pop %v627
      %v631 = vmul.f32 1.0, %v630
      %v632 = vmul.f32 %v629, 15.0
      %v633 = vmul.f32 %v631, 15.0
      %vm634 = vcmp.eq.s32.totalorder %v619, 7
      %v635 = vsel %vm634, %v632, %v616
      %v636 = vsel %vm634, %v633, %v617
      %v637 = vadd.f32 %v635, %v610
      %v638 = vadd.f32 %v636, %v613
      %vm639 = vcmask 130048
      %640 = vst.msk [vmem:[%s334] sm:$0xff] %vm639, %v637
      %641 = vst.msk [vmem:[%s334 + $0x8] sm:$0xff] %vm639, %v638
      %s642 = smul.u32 2, %s20
      %p643 = scmp.lt.s32.totalorder %s642, 3
      %s644 = scalar_select %p643, %s642, 3
      %s645 = smul.addr %s644, 8
      %s646 = scalar_lea.vmem %s9, %s645
      // Predicated region
      $region57: #{tpu_custom_call.1} parent=55 // pred_check
        %p647 = pneg %p232
      $region58: #{tpu_custom_call.1} parent=55 // pred_check_branch
        %649 = sbr.rel (%p647) target = $region60
      $region59: #{tpu_custom_call.1} parent=55 // pred_region
        %s650 = smul.u32 2, %s20
      $region60: #{tpu_custom_call.1} parent=55 // pred_fallthru
        _
    $region56: #{tpu_custom_call.1} parent=5 // pred_fallthru
      _
    %p651 = scmp.le.s32.totalorder 2, %s15
    // Predicated region
    $region61: #{tpu_custom_call.1} parent=5 // pred_check
      %p652 = pneg %p651
    $region62: #{tpu_custom_call.1} parent=5 // pred_check_branch
      %654 = sbr.rel (%p652) target = $region64
    $region63: #{tpu_custom_call.1} parent=5 // pred_region
      %s655 = ssub.s32 %s15, 2
      // Predicated region
      $region65: #{tpu_custom_call.1} parent=63 // pred_check
        %p656 = pneg %p238
      $region66: #{tpu_custom_call.1} parent=63 // pred_check_branch
        %658 = sbr.rel (%p656) target = $region68
      $region67: #{tpu_custom_call.1} parent=63 // pred_region
        %s659 = smul.u32 2, %s21
        %p660 = scmp.lt.s32.totalorder %s659, 3
        %s661 = scalar_select %p660, %s659, 3
        %s662 = smul.addr %s661, 8
        %s663 = scalar_lea.vmem %s9, %s662
      $region68: #{tpu_custom_call.1} parent=63 // pred_fallthru
        _
    $region64: #{tpu_custom_call.1} parent=5 // pred_fallthru
      _
  $region6: #{tpu_custom_call.1} parent=0 // loop_footer
    %s19 = sadd.s32 1, %s15
  $region7: #{tpu_custom_call.1} parent=0 // loop_footer_branch
    %14 = sbr.rel target = $region3
  $region8: #{tpu_custom_call.1} parent=0 // loop_exit
    _

</llo_original>
